<compile_context>
chip_gen: v5e
topology: v5e:2x2
jax: 0.10.0
libtpu: 0.0.40
codegen_flags: <defaults>
</compile_context>

<pallas_src>
import math

import jax
import jax.numpy as jnp
from jax import lax
from jax.experimental import pallas as pl
from jax.experimental.pallas import tpu as pltpu

_LOG_2PI = math.log(2.0 * math.pi)


def _gmm_loglike_kernel(x_ref, w_ref, nhw_ref, c_ref, o_ref):
    """One grid step: TN samples against all K components.

    x_ref:   (TN, D)  sample tile (pipelined over the grid; f32 or bf16)
    w_ref:   (K,  D)  inv_var[k] * mu[k]                 (hoisted, resident)
    nhw_ref: (K,  D)  -0.5 * inv_var[k] broadcast over D (hoisted, resident)
    c_ref:   (K,  1)  alpha[k] - D/2*log(2*pi) - D/2*logvar[k]
                      - 0.5*inv_var[k]*||mu[k]||^2
    o_ref:   (K, TN)  per-component log-likelihood tile
    """
    # Widen in VMEM (free VPU cast); HBM read stays at the caller's dtype.
    x = x_ref[...].astype(jnp.float32)                           # (TN, D)

    # "NT" dimension numbers: contract the last dim of both operands, so the
    # MXU consumes the x tile directly (no explicit transpose / relayout).
    nt_dims = (((1,), (1,)), ((), ()))

    # inv_var[k] * <mu[k], x[n]>
    cross = lax.dot_general(w_ref[...], x, nt_dims,
                            precision=lax.Precision.HIGHEST,
                            preferred_element_type=jnp.float32)  # (K, TN)

    # -0.5 * inv_var[k] * ||x[n]||^2 via a second tiny NT matmul: no ones
    # constant, no (8,TN) intermediate, no sublane extract, no broadcast mul.
    sq = lax.dot_general(nhw_ref[...], x * x, nt_dims,
                         precision=lax.Precision.HIGHEST,
                         preferred_element_type=jnp.float32)     # (K, TN)

    o_ref[...] = (c_ref[...] + cross + sq).astype(o_ref.dtype)


def _round_up(v, m):
    return -(-v // m) * m


def _working_set_bytes(tile_n, d, k, x_bytes=4):
    # double-buffered x tile + double-buffered (K, tile_n) output block
    # + resident (K, D) tables (w, nhw) and the (K, 1) constants.
    return (2 * tile_n * d * x_bytes      # x tile (in, pipelined)
            + 2 * k * tile_n * 4          # output block (pipelined)
            + 2 * 2 * k * d * 4           # w, nhw (resident, double-buffered)
            + 2 * k * 4)                  # const


def _pick_tile_n(n, d, k, requested, *, x_bytes=4, min_steps=8,
                 budget_bytes=24 << 20):
    """Largest lane-aligned (multiple-of-128) sample tile such that
      (a) the double-buffered working set stays inside a v7x-safe budget
          (never binds at D=32/K=8 — requested 8192 is ~2.6 MiB),
      (b) the grid keeps >= `min_steps` steps when N allows, so v7x's two
          TensorCores each get several steps of intra-TC DMA/compute overlap
          (neutral on single-TC v5e/v6e), and
      (c) the tile never exceeds the lane-padded sample count."""
    tile = max(128, (int(requested) // 128) * 128)
    while tile > 128 and _working_set_bytes(tile, d, k, x_bytes) > budget_bytes:
        tile -= 128
    # Cap so grid = cdiv(n, tile) stays >= min_steps when possible.
    step_cap = max(128, _round_up(-(-n // min_steps), 128))
    tile = min(tile, step_cap)
    # Never bigger than one lane-padded block of the whole input.
    tile = min(tile, max(128, _round_up(n, 128)))
    return tile


def mixture_model_forward(x, mu, logvar, alpha, *, tile_n=8192):
    """x: (N, D) f32 or bf16 (shipped as-is, no upcast copy);
    mu: (K, D); logvar: (K,); alpha: (K,)  ->  (K, N) float32."""
    n, d = x.shape
    k, d2 = mu.shape
    assert d == d2

    mu = mu.astype(jnp.float32)
    logvar = logvar.reshape(k).astype(jnp.float32)
    alpha = alpha.reshape(k).astype(jnp.float32)

    # Hoist every per-component quantity out of the kernel: the grid is a
    # sequential loop on one TensorCore, so exp / ||mu||^2 / Gaussian constants
    # would otherwise be recomputed on every grid step.
    inv_var = jnp.exp(-logvar)                                    # (K,)
    const = (alpha
             - 0.5 * d * _LOG_2PI
             - 0.5 * d * logvar
             - 0.5 * inv_var * jnp.sum(mu * mu, axis=-1))         # (K,)
    w = inv_var[:, None] * mu                                     # (K, D)
    nhw = jnp.broadcast_to((-0.5 * inv_var)[:, None], (k, d))     # (K, D)
    const = const[:, None]                                        # (K, 1)

    x_bytes = jnp.dtype(x.dtype).itemsize
    tn = _pick_tile_n(n, d, k, tile_n, x_bytes=x_bytes)
    grid = (pl.cdiv(n, tn),)

    # Right-sized scoped VMEM: ~2x working set + headroom, never below the
    # 16 MiB v5e default, never above v7x's 64 MiB physical VMEM.
    ws = _working_set_bytes(tn, d, k, x_bytes)
    vmem_limit = int(min(max(2 * ws + (4 << 20), 16 << 20), 64 << 20))

    # No jnp.pad / output trim: Pallas masks the boundary block itself.
    # For very large K (or huge D), add a second grid axis tiling K in
    # multiples of 8; unnecessary at K=8.
    # If profiling on v6e still shows exposed x DMA, add
    # pipeline_mode=pl.Buffered(3) to the x BlockSpec rather than shrinking tn.
    out = pl.pallas_call(
        _gmm_loglike_kernel,
        out_shape=jax.ShapeDtypeStruct((k, n), jnp.float32),
        grid_spec=pltpu.PrefetchScalarGridSpec(
            num_scalar_prefetch=0,
            grid=grid,
            in_specs=[
                pl.BlockSpec((tn, d), lambda i: (i, 0)),   # x tile (pipelined)
                pl.BlockSpec((k, d), lambda i: (0, 0)),    # inv_var * mu
                pl.BlockSpec((k, d), lambda i: (0, 0)),    # -0.5 * inv_var
                pl.BlockSpec((k, 1), lambda i: (0, 0)),    # per-component const
            ],
            out_specs=pl.BlockSpec((k, tn), lambda i: (0, i)),
        ),
        compiler_params=pltpu.CompilerParams(
            dimension_semantics=("parallel",),
            vmem_limit_bytes=vmem_limit),
    )(x, w, nhw, const)

    return out


def mixture_model_forward_ref(x, mu, logvar, alpha):
    """Pure-JAX reference matching the PyTorch broadcasting semantics."""
    d = x.shape[-1]
    diff = x.astype(jnp.float32)[None, :, :] - mu[:, None, :]    # (K, N, D)
    a = jnp.sqrt(jnp.sum(diff * diff, axis=-1))                  # LpMetric p=2
    return (alpha[:, None]
            - 0.5 * d * _LOG_2PI
            - 0.5 * d * logvar[:, None]
            - 0.5 * (a ** 2) / jnp.exp(logvar[:, None]))


if __name__ == "__main__":
    key = jax.random.PRNGKey(0)
    k_x, k_mu, k_lv = jax.random.split(key, 3)

    # Small shapes consistent with the module (K components, D features,
    # N samples). N=1000 is deliberately NOT a multiple of 128 to exercise the
    # unpadded boundary block (masked writeback, no jnp.pad copy of x).
    K, D, N = 8, 32, 1000

    # Deterministic init mirroring nn.Parameter(torch.rand(...)) / log(1/K).
    mu = jax.random.uniform(k_mu, (K, D), dtype=jnp.float32)
    logvar = jax.random.uniform(k_lv, (K,), dtype=jnp.float32)
    alpha = jnp.log(jnp.full((K,), 1.0 / K, dtype=jnp.float32))
    x = jax.random.uniform(k_x, (N, D), dtype=jnp.float32)
    # Bandwidth note: passing x.astype(jnp.bfloat16) (done by the upstream
    # producer, not as an extra op here) halves the dominant HBM read; the
    # kernel widens it in VMEM and still accumulates in f32.

    out = jax.block_until_ready(mixture_model_forward(x, mu, logvar, alpha))
    ref = mixture_model_forward_ref(x, mu, logvar, alpha)

    assert out.shape == (K, N)
    # Precision.HIGHEST matmuls keep the ||x||^2 - 2<x,mu> + ||mu||^2 expansion
    # close to exact f32, so a tight tolerance vs the direct-subtraction
    # reference holds.
    assert jnp.allclose(out, ref, rtol=1e-3, atol=1e-3), "mismatch vs reference"

    print("KERNEL_OK")
</pallas_src>

<mosaic_0001>
module attributes {stable_mosaic.version = 11 : i64} {
  func.func @_gmm_loglike_kernel(%arg0: i32, %arg1: memref<128x32xf32, #tpu.memory_space<vmem>>, %arg2: memref<8x32xf32, #tpu.memory_space<vmem>>, %arg3: memref<8x32xf32, #tpu.memory_space<vmem>>, %arg4: memref<8x1xf32, #tpu.memory_space<vmem>>, %arg5: memref<8x128xf32, #tpu.memory_space<vmem>>) attributes {dimension_semantics = [#tpu.dimension_semantics<parallel>], iteration_bounds = array<i64: 8>, scalar_prefetch = 0 : i64, scratch_operands = 0 : i64, tpu.core_type = #tpu.core_type<tc>, window_params = [{transform_indices = @transform_0, window_bounds = array<i64: 128, 32>}, {pipeline_mode = #tpu.pipeline_mode<synchronous>, transform_indices = @transform_1, window_bounds = array<i64: 8, 32>}, {pipeline_mode = #tpu.pipeline_mode<synchronous>, transform_indices = @transform_2, window_bounds = array<i64: 8, 32>}, {pipeline_mode = #tpu.pipeline_mode<synchronous>, transform_indices = @transform_3, window_bounds = array<i64: 8, 1>}, {transform_indices = @transform_4, window_bounds = array<i64: 8, 128>}]} {
    %c0 = arith.constant 0 : index
    %c0_0 = arith.constant 0 : index
    %0 = vector.load %arg1[%c0, %c0_0] : memref<128x32xf32, #tpu.memory_space<vmem>>, vector<128x32xf32>
    %c0_1 = arith.constant 0 : index
    %c0_2 = arith.constant 0 : index
    %1 = vector.load %arg2[%c0_1, %c0_2] : memref<8x32xf32, #tpu.memory_space<vmem>>, vector<8x32xf32>
    %cst = arith.constant dense<0.000000e+00> : vector<8x128xf32>
    %2 = tpu.matmul %1, %0, %cst {dimension_numbers = #tpu.dot_dimension_numbers<[1], [1], [0], [0], [0, 0, 1, 0], [], []>, precision = #tpu.contract_precision<fp32>} : vector<8x32xf32>, vector<128x32xf32>, vector<8x128xf32> -> vector<8x128xf32>
    %c0_3 = arith.constant 0 : index
    %c0_4 = arith.constant 0 : index
    %3 = vector.load %arg3[%c0_3, %c0_4] : memref<8x32xf32, #tpu.memory_space<vmem>>, vector<8x32xf32>
    %4 = arith.mulf %0, %0 : vector<128x32xf32>
    %cst_5 = arith.constant dense<0.000000e+00> : vector<8x128xf32>
    %5 = tpu.matmul %3, %4, %cst_5 {dimension_numbers = #tpu.dot_dimension_numbers<[1], [1], [0], [0], [0, 0, 1, 0], [], []>, precision = #tpu.contract_precision<fp32>} : vector<8x32xf32>, vector<128x32xf32>, vector<8x128xf32> -> vector<8x128xf32>
    %c0_6 = arith.constant 0 : index
    %c0_7 = arith.constant 0 : index
    %6 = vector.load %arg4[%c0_6, %c0_7] : memref<8x1xf32, #tpu.memory_space<vmem>>, vector<8x1xf32>
    %7 = vector.broadcast %6 : vector<8x1xf32> to vector<8x128xf32>
    %8 = arith.addf %7, %2 : vector<8x128xf32>
    %9 = arith.addf %8, %5 : vector<8x128xf32>
    %c0_8 = arith.constant 0 : index
    %c0_9 = arith.constant 0 : index
    %10 = vector.load %arg5[%c0_8, %c0_9] : memref<8x128xf32, #tpu.memory_space<vmem>>, vector<8x128xf32>
    tpu.vector_store %arg5[%c0_8, %c0_9], %9 {strides = array<i32>} : memref<8x128xf32, #tpu.memory_space<vmem>>, vector<8x128xf32>,
    return
  }
  func.func @transform_0(%arg0: i32) -> (i32, i32) {
    %c0_i32 = arith.constant 0 : i32
    %c0_i32_0 = arith.constant 0 : i32
    return %arg0, %c0_i32 : i32, i32
  }
  func.func @transform_1(%arg0: i32) -> (i32, i32) {
    %c0_i32 = arith.constant 0 : i32
    %c0_i32_0 = arith.constant 0 : i32
    %c0_i32_1 = arith.constant 0 : i32
    return %c0_i32, %c0_i32_0 : i32, i32
  }
  func.func @transform_2(%arg0: i32) -> (i32, i32) {
    %c0_i32 = arith.constant 0 : i32
    %c0_i32_0 = arith.constant 0 : i32
    %c0_i32_1 = arith.constant 0 : i32
    return %c0_i32, %c0_i32_0 : i32, i32
  }
  func.func @transform_3(%arg0: i32) -> (i32, i32) {
    %c0_i32 = arith.constant 0 : i32
    %c0_i32_0 = arith.constant 0 : i32
    %c0_i32_1 = arith.constant 0 : i32
    return %c0_i32, %c0_i32_0 : i32, i32
  }
  func.func @transform_4(%arg0: i32) -> (i32, i32) {
    %c0_i32 = arith.constant 0 : i32
    %c0_i32_0 = arith.constant 0 : i32
    return %c0_i32, %arg0 : i32, i32
  }
}

</mosaic_0001>

<llo_original>
// kernel: tpu_custom_call.1
$region0: #{tpu_custom_call.1}
  #allocation0 [shape = 'u32[]', space=smem, size = 0x4, offset = 0x4, fixed_abs, tag = 'smem constant byte address 0x4 - core index']
  #allocation1 [shape = 'u32[72,128]{1,0:T(1,128)}', space=vmem, size = 0x9000, scoped, tag = 'internal scratch']
  %s0 = inlined_call_operand.vmem [shape: f32[1000,32], index: 0, kind: input, shape index: {}]
  %s1 = inlined_call_operand.vmem [shape: f32[8,32], index: 1, kind: input, shape index: {}]
  %s2 = inlined_call_operand.vmem [shape: f32[8,32], index: 2, kind: input, shape index: {}]
  %s3 = inlined_call_operand.vmem [shape: f32[8,1], index: 3, kind: input, shape index: {}]
  %s4 = inlined_call_operand.hbm [shape: f32[8,1000], index: 4, kind: output, shape index: {}]
  %s5 = sld [smem:[#allocation0]]
  $region49: #{tpu_custom_call.1} parent=0
    _
  %s7 = ssub.s32 1, %s5
  %s8 = scalar_select 0, %s7, %s5
  $region1: #{tpu_custom_call.1} parent=0
    #allocation2 [shape = 'u8[8192]{0}', space=vmem, size = 0x2000, scoped, tag = 'output window, operand 0']
    #allocation3 [shape = 's32[2]{0}', space=sflag, size = 0x8, scoped, tag = 'scoped memory for tpu_custom_call.1']
    %9 = vsyncpa [#allocation3], 0
    %s10 = scalar_lea.sflag [#allocation3], 1
    %11 = vsyncpa %s10, 0
    loop: start=0, step=1, limit=10
    $region2: #{tpu_custom_call.1} parent=1 // loop_pre_header
      _
    $region3: #{tpu_custom_call.1} parent=1 // loop_header
      %s13 = sphi 0, %s17
      %p14 = scmp.ge.s32.totalorder %s13, 10
      %s23 = sphi 0, %s25
      %s26 = sphi 0, %s23
      %s27 = sphi 0, %s26
      %s43 = sphi 0, %s27
      %s47 = sphi 0, %s47
      %s49 = sphi 0, %s47
      %s50 = sphi 0, %s49
      %s64 = sphi 0, %s50
      %s68 = sphi 0, %s68
      %s70 = sphi 0, %s68
      %s71 = sphi 0, %s70
      %s85 = sphi 0, %s71
      %s89 = sphi 0, %s89
      %s91 = sphi 0, %s89
      %s92 = sphi 0, %s91
      %s106 = sphi 0, %s92
      %s112 = sphi 0, %s114
      %s115 = sphi 0, %s112
      %s116 = sphi 0, %s115
      %s132 = sphi 0, %s116
    $region4: #{tpu_custom_call.1} parent=1 // loop_header_branch
      %16 = sbr.rel (%p14) target = $region8
    $region5: #{tpu_custom_call.1} parent=1 // loop_body
      %s18 = ssub.s32 %s13, 1
      %s19 = ssub.s32 %s13, 2
      %s20 = sadd.s32 %s13, 1
      %s21 = ssub.s32 %s13, %s20
      %p22 = scmp.eq.s32.totalorder %s21, 0
      %s24 = sadd.s32 %s23, 1
      %s25 = scalar_select %p22, %s23, %s24
      %p28 = pneg %p22
      %p29 = scmp.eq.s32.totalorder %s13, 7
      %p30 = por %p28, %p29
      %p31 = scmp.ne.s32.totalorder %s23, %s26
      %p32 = scmp.eq.s32.totalorder %s13, 0
      %p33 = por %p31, %p32
      %p34 = scmp.ne.s32.totalorder %s23, %s26
      %p35 = scmp.eq.s32.totalorder %s18, 7
      %p36 = por %p34, %p35
      %p37 = scmp.ne.s32.totalorder %s26, %s27
      %p38 = scmp.eq.s32.totalorder %s18, 0
      %p39 = por %p37, %p38
      %p40 = scmp.ne.s32.totalorder %s26, %s27
      %p41 = scmp.eq.s32.totalorder %s19, 7
      %p42 = por %p40, %p41
      %p44 = scmp.ne.s32.totalorder %s27, %s43
      %p45 = scmp.eq.s32.totalorder %s19, 0
      %p46 = por %p44, %p45
      %s48 = sadd.s32 %s47, 1
      %p51 = scmp.eq.s32.totalorder %s13, 7
      %p52 = scmp.ne.s32.totalorder %s47, %s49
      %p53 = scmp.eq.s32.totalorder %s13, 0
      %p54 = por %p52, %p53
      %p55 = scmp.ne.s32.totalorder %s47, %s49
      %p56 = scmp.eq.s32.totalorder %s18, 7
      %p57 = por %p55, %p56
      %p58 = scmp.ne.s32.totalorder %s49, %s50
      %p59 = scmp.eq.s32.totalorder %s18, 0
      %p60 = por %p58, %p59
      %p61 = scmp.ne.s32.totalorder %s49, %s50
      %p62 = scmp.eq.s32.totalorder %s19, 7
      %p63 = por %p61, %p62
      %p65 = scmp.ne.s32.totalorder %s50, %s64
      %p66 = scmp.eq.s32.totalorder %s19, 0
      %p67 = por %p65, %p66
      %s69 = sadd.s32 %s68, 1
      %p72 = scmp.eq.s32.totalorder %s13, 7
      %p73 = scmp.ne.s32.totalorder %s68, %s70
      %p74 = scmp.eq.s32.totalorder %s13, 0
      %p75 = por %p73, %p74
      %p76 = scmp.ne.s32.totalorder %s68, %s70
      %p77 = scmp.eq.s32.totalorder %s18, 7
      %p78 = por %p76, %p77
      %p79 = scmp.ne.s32.totalorder %s70, %s71
      %p80 = scmp.eq.s32.totalorder %s18, 0
      %p81 = por %p79, %p80
      %p82 = scmp.ne.s32.totalorder %s70, %s71
      %p83 = scmp.eq.s32.totalorder %s19, 7
      %p84 = por %p82, %p83
      %p86 = scmp.ne.s32.totalorder %s71, %s85
      %p87 = scmp.eq.s32.totalorder %s19, 0
      %p88 = por %p86, %p87
      %s90 = sadd.s32 %s89, 1
      %p93 = scmp.eq.s32.totalorder %s13, 7
      %p94 = scmp.ne.s32.totalorder %s89, %s91
      %p95 = scmp.eq.s32.totalorder %s13, 0
      %p96 = por %p94, %p95
      %p97 = scmp.ne.s32.totalorder %s89, %s91
      %p98 = scmp.eq.s32.totalorder %s18, 7
      %p99 = por %p97, %p98
      %p100 = scmp.ne.s32.totalorder %s91, %s92
      %p101 = scmp.eq.s32.totalorder %s18, 0
      %p102 = por %p100, %p101
      %p103 = scmp.ne.s32.totalorder %s91, %s92
      %p104 = scmp.eq.s32.totalorder %s19, 7
      %p105 = por %p103, %p104
      %p107 = scmp.ne.s32.totalorder %s92, %s106
      %p108 = scmp.eq.s32.totalorder %s19, 0
      %p109 = por %p107, %p108
      %s110 = ssub.s32 %s13, %s20
      %p111 = scmp.eq.s32.totalorder %s110, 0
      %s113 = sadd.s32 %s112, 1
      %s114 = scalar_select %p111, %s112, %s113
      %p117 = pneg %p111
      %p118 = scmp.eq.s32.totalorder %s13, 7
      %p119 = por %p117, %p118
      %p120 = scmp.ne.s32.totalorder %s112, %s115
      %p121 = scmp.eq.s32.totalorder %s13, 0
      %p122 = por %p120, %p121
      %p123 = scmp.ne.s32.totalorder %s112, %s115
      %p124 = scmp.eq.s32.totalorder %s18, 7
      %p125 = por %p123, %p124
      %p126 = scmp.ne.s32.totalorder %s115, %s116
      %p127 = scmp.eq.s32.totalorder %s18, 0
      %p128 = por %p126, %p127
      %p129 = scmp.ne.s32.totalorder %s115, %s116
      %p130 = scmp.eq.s32.totalorder %s19, 7
      %p131 = por %p129, %p130
      %p133 = scmp.ne.s32.totalorder %s116, %s132
      %p134 = scmp.eq.s32.totalorder %s19, 0
      %p135 = por %p133, %p134
      %p136 = scmp.le.s32.totalorder 1, %s13
      %p137 = scmp.lt.s32.totalorder %s13, 9
      %p138 = pnand %p136, %p137
      %p139 = pneg %p138
      // Predicated region
      $region9: #{tpu_custom_call.1} parent=5 // pred_check
        _
      $region10: #{tpu_custom_call.1} parent=5 // pred_check_branch
        %141 = sbr.rel (%p138) target = $region12
      $region11: #{tpu_custom_call.1} parent=5 // pred_region
        %s142 = ssub.s32 %s13, 1
        // Predicated region
        $region13: #{tpu_custom_call.1} parent=11 // pred_check
          %p143 = pneg %p60
        $region14: #{tpu_custom_call.1} parent=11 // pred_check_branch
          %145 = sbr.rel (%p143) target = $region16
        $region15: #{tpu_custom_call.1} parent=11 // pred_region
          _
        $region16: #{tpu_custom_call.1} parent=11 // pred_fallthru
          _
        // Predicated region
        $region17: #{tpu_custom_call.1} parent=11 // pred_check
          %p146 = pneg %p81
        $region18: #{tpu_custom_call.1} parent=11 // pred_check_branch
          %148 = sbr.rel (%p146) target = $region20
        $region19: #{tpu_custom_call.1} parent=11 // pred_region
          _
        $region20: #{tpu_custom_call.1} parent=11 // pred_fallthru
          _
        // Predicated region
        $region21: #{tpu_custom_call.1} parent=11 // pred_check
          %p149 = pneg %p102
        $region22: #{tpu_custom_call.1} parent=11 // pred_check_branch
          %151 = sbr.rel (%p149) target = $region24
        $region23: #{tpu_custom_call.1} parent=11 // pred_region
          _
        $region24: #{tpu_custom_call.1} parent=11 // pred_fallthru
          _
      $region12: #{tpu_custom_call.1} parent=5 // pred_fallthru
        _
      %p152 = scmp.lt.s32.totalorder %s13, 8
      // Predicated region
      $region25: #{tpu_custom_call.1} parent=5 // pred_check
        %p153 = pneg %p152
      $region26: #{tpu_custom_call.1} parent=5 // pred_check_branch
        %155 = sbr.rel (%p153) target = $region28
      $region27: #{tpu_custom_call.1} parent=5 // pred_region
        // Predicated region
        $region29: #{tpu_custom_call.1} parent=27 // pred_check
          %p156 = pneg %p33
        $region30: #{tpu_custom_call.1} parent=27 // pred_check_branch
          %158 = sbr.rel (%p156) target = $region32
        $region31: #{tpu_custom_call.1} parent=27 // pred_region
          %s159 = smul.u32 16, %s13
          %s160 = ssub.s32 125, %s159
          %p161 = scmp.lt.s32.totalorder %s160, 16
          %s162 = scalar_select %p161, %s160, 16
          %s163 = smul.u32 8, %s162
          %p164 = scmp.lt.s32.totalorder %s159, 124
          %s165 = scalar_select %p164, %s159, 124
          %s166 = smul.addr %s165, 8
          %s167 = scalar_lea.vmem %s0, %s166
          %s168 = smul.u32 16, %s13
          %s169 = ssub.s32 125, %s168
          %p170 = scmp.lt.s32.totalorder %s169, 16
          %s171 = scalar_select %p170, %s169, 16
          %s172 = smul.u32 8, %s171
        $region32: #{tpu_custom_call.1} parent=27 // pred_fallthru
          _
      $region28: #{tpu_custom_call.1} parent=5 // pred_fallthru
        _
      %p173 = scmp.le.s32.totalorder 1, %s13
      %p174 = scmp.lt.s32.totalorder %s13, 9
      %p175 = pnand %p173, %p174
      %p176 = pneg %p175
      // Predicated region
      $region33: #{tpu_custom_call.1} parent=5 // pred_check
        _
      $region34: #{tpu_custom_call.1} parent=5 // pred_check_branch
        %178 = sbr.rel (%p175) target = $region36
      $region35: #{tpu_custom_call.1} parent=5 // pred_region
        %s179 = ssub.s32 %s13, 1
        %s180 = smul.u32 16, %s18
        %s181 = ssub.s32 125, %s180
        %p182 = scmp.lt.s32.totalorder %s181, 16
        %s183 = scalar_select %p182, %s181, 16
        %s184 = smul.u32 8, %s183
        %p185 = scmp.lt.s32.totalorder %s180, 124
        %s186 = scalar_select %p185, %s180, 124
        %s187 = smul.addr %s186, 8
        %s188 = scalar_lea.vmem %s0, %s187
        %p189 = pneg %p39
        %p190 = pneg %p36
        %p191 = pneg %p60
        %p192 = pneg %p57
        %p193 = pneg %p81
        %p194 = pneg %p78
        %p195 = pneg %p102
        %p196 = pneg %p99
        %p197 = pneg %p128
        %p198 = pneg %p125
        %s199 = sand.u32 %s115, 1
        %s200 = scalar_lea.sflag [#allocation3], %s199
        %s201 = sand.u32 %s115, 1
        %s202 = smul.addr %s201, 8
        %s203 = scalar_lea.vmem [#allocation2], %s202
        %s204 = smul.u32 16, %s18
        %s205 = ssub.s32 125, %s204
        %p206 = scmp.lt.s32.totalorder %s205, 16
        %s207 = scalar_select %p206, %s205, 16
        %s208 = smul.u32 8, %s207
        %p209 = scmp.lt.s32.totalorder %s204, 124
        %s210 = scalar_select %p209, %s204, 124
        %s211 = smul.addr %s210, 8
        %s212 = scalar_lea.vmem %s0, %s211
        %s213 = smul.u32 16, %s18
        %s214 = ssub.s32 125, %s213
        %p215 = scmp.lt.s32.totalorder %s214, 16
        %s216 = scalar_select %p215, %s214, 16
        %s217 = smul.u32 8, %s216
        %v218 = vld [vmem:[%s212] sm:$0xff]
        %v219 = vld [vmem:[%s212 + $0x8] sm:$0xff]
        %v220 = vld [vmem:[%s212 + $0x10] sm:$0xff]
        %v221 = vld [vmem:[%s212 + $0x18] sm:$0xff]
        %v222 = vld [vmem:[%s212 + $0x20] sm:$0xff]
        %v223 = vld [vmem:[%s212 + $0x28] sm:$0xff]
        %v224 = vld [vmem:[%s212 + $0x30] sm:$0xff]
        %v225 = vld [vmem:[%s212 + $0x38] sm:$0xff]
        %v226 = vld [vmem:[%s212 + $0x40] sm:$0xff]
        %v227 = vld [vmem:[%s212 + $0x48] sm:$0xff]
        %v228 = vld [vmem:[%s212 + $0x50] sm:$0xff]
        %v229 = vld [vmem:[%s212 + $0x58] sm:$0xff]
        %v230 = vld [vmem:[%s212 + $0x60] sm:$0xff]
        %v231 = vld [vmem:[%s212 + $0x68] sm:$0xff]
        %v232 = vld [vmem:[%s212 + $0x70] sm:$0xff]
        %v233 = vld [vmem:[%s212 + $0x78] sm:$0xff]
        %v234 = vld [vmem:[%s1] sm:$0xff]
        %vm235 = vcmask 261120
        %v237 = vsel %vm235, %v234, 0
        %v240 = vsel %vm235, %v218, 0
        %v243 = vsel %vm235, %v219, 0
        %v246 = vsel %vm235, %v220, 0
        %v249 = vsel %vm235, %v221, 0
        %v252 = vsel %vm235, %v222, 0
        %v255 = vsel %vm235, %v223, 0
        %v258 = vsel %vm235, %v224, 0
        %v261 = vsel %vm235, %v225, 0
        %v264 = vsel %vm235, %v226, 0
        %v267 = vsel %vm235, %v227, 0
        %v270 = vsel %vm235, %v228, 0
        %v273 = vsel %vm235, %v229, 0
        %v276 = vsel %vm235, %v230, 0
        %v279 = vsel %vm235, %v231, 0
        %v282 = vsel %vm235, %v232, 0
        %v285 = vsel %vm235, %v233, 0
        %v287 = vand.u32 %v285, 4294901760
        %288 = vmatpush.xpose.msra.mxu0 %v287
        %v289 = vand.u32 %v282, 4294901760
        %290 = vmatpush.xpose.msra.mxu0 %v289
        %v291 = vand.u32 %v279, 4294901760
        %292 = vmatpush.xpose.msra.mxu0 %v291
        %v293 = vand.u32 %v276, 4294901760
        %294 = vmatpush.xpose.msra.mxu0 %v293
        %v295 = vand.u32 %v273, 4294901760
        %296 = vmatpush.xpose.msra.mxu0 %v295
        %v297 = vand.u32 %v270, 4294901760
        %298 = vmatpush.xpose.msra.mxu0 %v297
        %v299 = vand.u32 %v267, 4294901760
        %300 = vmatpush.xpose.msra.mxu0 %v299
        %v301 = vand.u32 %v264, 4294901760
        %302 = vmatpush.xpose.msra.mxu0 %v301
        %v303 = vand.u32 %v261, 4294901760
        %304 = vmatpush.xpose.msra.mxu0 %v303
        %v305 = vand.u32 %v258, 4294901760
        %306 = vmatpush.xpose.msra.mxu0 %v305
        %v307 = vand.u32 %v255, 4294901760
        %308 = vmatpush.xpose.msra.mxu0 %v307
        %v309 = vand.u32 %v252, 4294901760
        %310 = vmatpush.xpose.msra.mxu0 %v309
        %v311 = vand.u32 %v249, 4294901760
        %312 = vmatpush.xpose.msra.mxu0 %v311
        %v313 = vand.u32 %v246, 4294901760
        %314 = vmatpush.xpose.msra.mxu0 %v313
        %v315 = vand.u32 %v243, 4294901760
        %316 = vmatpush.xpose.msra.mxu0 %v315
        %v317 = vand.u32 %v240, 4294901760
        %318 = vmatpush.xpose.msra.mxu0 %v317
        %v319 = vand.u32 %v237, 4294901760
        %v320 = vsub.f32 %v237, %v319
        %v321 = vand.u32 %v320, 4294901760
        %v322 = vsub.f32 %v320, %v321
        %v323 = vand.u32 %v322, 4294901760
        %324 = vmatmul.f32.gmra.mxu0 %v323
        %v325 = vpop.f32.mrf.mxu0
        %v326 = vadd.f32 0.0, %v325
        %327 = vdwg.mxu0
        %v328 = vand.u32 %v285, 4294901760
        %v329 = vsub.f32 %v285, %v328
        %v330 = vand.u32 %v329, 4294901760
        %v331 = vsub.f32 %v329, %v330
        %v332 = vand.u32 %v331, 4294901760
        %333 = vmatpush.xpose.msra.mxu0 %v332
        %v334 = vand.u32 %v282, 4294901760
        %v335 = vsub.f32 %v282, %v334
        %v336 = vand.u32 %v335, 4294901760
        %v337 = vsub.f32 %v335, %v336
        %v338 = vand.u32 %v337, 4294901760
        %339 = vmatpush.xpose.msra.mxu0 %v338
        %v340 = vand.u32 %v279, 4294901760
        %v341 = vsub.f32 %v279, %v340
        %v342 = vand.u32 %v341, 4294901760
        %v343 = vsub.f32 %v341, %v342
        %v344 = vand.u32 %v343, 4294901760
        %345 = vmatpush.xpose.msra.mxu0 %v344
        %v346 = vand.u32 %v276, 4294901760
        %v347 = vsub.f32 %v276, %v346
        %v348 = vand.u32 %v347, 4294901760
        %v349 = vsub.f32 %v347, %v348
        %v350 = vand.u32 %v349, 4294901760
        %351 = vmatpush.xpose.msra.mxu0 %v350
        %v352 = vand.u32 %v273, 4294901760
        %v353 = vsub.f32 %v273, %v352
        %v354 = vand.u32 %v353, 4294901760
        %v355 = vsub.f32 %v353, %v354
        %v356 = vand.u32 %v355, 4294901760
        %357 = vmatpush.xpose.msra.mxu0 %v356
        %v358 = vand.u32 %v270, 4294901760
        %v359 = vsub.f32 %v270, %v358
        %v360 = vand.u32 %v359, 4294901760
        %v361 = vsub.f32 %v359, %v360
        %v362 = vand.u32 %v361, 4294901760
        %363 = vmatpush.xpose.msra.mxu0 %v362
        %v364 = vand.u32 %v267, 4294901760
        %v365 = vsub.f32 %v267, %v364
        %v366 = vand.u32 %v365, 4294901760
        %v367 = vsub.f32 %v365, %v366
        %v368 = vand.u32 %v367, 4294901760
        %369 = vmatpush.xpose.msra.mxu0 %v368
        %v370 = vand.u32 %v264, 4294901760
        %v371 = vsub.f32 %v264, %v370
        %v372 = vand.u32 %v371, 4294901760
        %v373 = vsub.f32 %v371, %v372
        %v374 = vand.u32 %v373, 4294901760
        %375 = vmatpush.xpose.msra.mxu0 %v374
        %v376 = vand.u32 %v261, 4294901760
        %v377 = vsub.f32 %v261, %v376
        %v378 = vand.u32 %v377, 4294901760
        %v379 = vsub.f32 %v377, %v378
        %v380 = vand.u32 %v379, 4294901760
        %381 = vmatpush.xpose.msra.mxu0 %v380
        %v382 = vand.u32 %v258, 4294901760
        %v383 = vsub.f32 %v258, %v382
        %v384 = vand.u32 %v383, 4294901760
        %v385 = vsub.f32 %v383, %v384
        %v386 = vand.u32 %v385, 4294901760
        %387 = vmatpush.xpose.msra.mxu0 %v386
        %v388 = vand.u32 %v255, 4294901760
        %v389 = vsub.f32 %v255, %v388
        %v390 = vand.u32 %v389, 4294901760
        %v391 = vsub.f32 %v389, %v390
        %v392 = vand.u32 %v391, 4294901760
        %393 = vmatpush.xpose.msra.mxu0 %v392
        %v394 = vand.u32 %v252, 4294901760
        %v395 = vsub.f32 %v252, %v394
        %v396 = vand.u32 %v395, 4294901760
        %v397 = vsub.f32 %v395, %v396
        %v398 = vand.u32 %v397, 4294901760
        %399 = vmatpush.xpose.msra.mxu0 %v398
        %v400 = vand.u32 %v249, 4294901760
        %v401 = vsub.f32 %v249, %v400
        %v402 = vand.u32 %v401, 4294901760
        %v403 = vsub.f32 %v401, %v402
        %v404 = vand.u32 %v403, 4294901760
        %405 = vmatpush.xpose.msra.mxu0 %v404
        %v406 = vand.u32 %v246, 4294901760
        %v407 = vsub.f32 %v246, %v406
        %v408 = vand.u32 %v407, 4294901760
        %v409 = vsub.f32 %v407, %v408
        %v410 = vand.u32 %v409, 4294901760
        %411 = vmatpush.xpose.msra.mxu0 %v410
        %v412 = vand.u32 %v243, 4294901760
        %v413 = vsub.f32 %v243, %v412
        %v414 = vand.u32 %v413, 4294901760
        %v415 = vsub.f32 %v413, %v414
        %v416 = vand.u32 %v415, 4294901760
        %417 = vmatpush.xpose.msra.mxu0 %v416
        %v418 = vand.u32 %v240, 4294901760
        %v419 = vsub.f32 %v240, %v418
        %v420 = vand.u32 %v419, 4294901760
        %v421 = vsub.f32 %v419, %v420
        %v422 = vand.u32 %v421, 4294901760
        %423 = vmatpush.xpose.msra.mxu0 %v422
        %v424 = vand.u32 %v237, 4294901760
        %425 = vmatmul.f32.gmra.mxu0 %v424
        %v426 = vpop.f32.mrf.mxu0
        %v427 = vadd.f32 %v326, %v426
        %428 = vdwg.mxu0
        %v429 = vand.u32 %v285, 4294901760
        %v430 = vsub.f32 %v285, %v429
        %431 = vmatpush.xpose.msra.mxu0 %v430
        %v432 = vand.u32 %v282, 4294901760
        %v433 = vsub.f32 %v282, %v432
        %434 = vmatpush.xpose.msra.mxu0 %v433
        %v435 = vand.u32 %v279, 4294901760
        %v436 = vsub.f32 %v279, %v435
        %437 = vmatpush.xpose.msra.mxu0 %v436
        %v438 = vand.u32 %v276, 4294901760
        %v439 = vsub.f32 %v276, %v438
        %440 = vmatpush.xpose.msra.mxu0 %v439
        %v441 = vand.u32 %v273, 4294901760
        %v442 = vsub.f32 %v273, %v441
        %443 = vmatpush.xpose.msra.mxu0 %v442
        %v444 = vand.u32 %v270, 4294901760
        %v445 = vsub.f32 %v270, %v444
        %446 = vmatpush.xpose.msra.mxu0 %v445
        %v447 = vand.u32 %v267, 4294901760
        %v448 = vsub.f32 %v267, %v447
        %449 = vmatpush.xpose.msra.mxu0 %v448
        %v450 = vand.u32 %v264, 4294901760
        %v451 = vsub.f32 %v264, %v450
        %452 = vmatpush.xpose.msra.mxu0 %v451
        %v453 = vand.u32 %v261, 4294901760
        %v454 = vsub.f32 %v261, %v453
        %455 = vmatpush.xpose.msra.mxu0 %v454
        %v456 = vand.u32 %v258, 4294901760
        %v457 = vsub.f32 %v258, %v456
        %458 = vmatpush.xpose.msra.mxu0 %v457
        %v459 = vand.u32 %v255, 4294901760
        %v460 = vsub.f32 %v255, %v459
        %461 = vmatpush.xpose.msra.mxu0 %v460
        %v462 = vand.u32 %v252, 4294901760
        %v463 = vsub.f32 %v252, %v462
        %464 = vmatpush.xpose.msra.mxu0 %v463
        %v465 = vand.u32 %v249, 4294901760
        %v466 = vsub.f32 %v249, %v465
        %467 = vmatpush.xpose.msra.mxu0 %v466
        %v468 = vand.u32 %v246, 4294901760
        %v469 = vsub.f32 %v246, %v468
        %470 = vmatpush.xpose.msra.mxu0 %v469
        %v471 = vand.u32 %v243, 4294901760
        %v472 = vsub.f32 %v243, %v471
        %473 = vmatpush.xpose.msra.mxu0 %v472
        %v474 = vand.u32 %v240, 4294901760
        %v475 = vsub.f32 %v240, %v474
        %476 = vmatpush.xpose.msra.mxu0 %v475
        %v477 = vand.u32 %v237, 4294901760
        %v478 = vsub.f32 %v237, %v477
        %479 = vmatmul.f32.gmra.mxu0 %v478
        %v480 = vpop.f32.mrf.mxu0
        %v481 = vadd.f32 %v427, %v480
        %482 = vdwg.mxu0
        %v483 = vand.u32 %v285, 4294901760
        %484 = vmatpush.xpose.msra.mxu0 %v483
        %v485 = vand.u32 %v282, 4294901760
        %486 = vmatpush.xpose.msra.mxu0 %v485
        %v487 = vand.u32 %v279, 4294901760
        %488 = vmatpush.xpose.msra.mxu0 %v487
        %v489 = vand.u32 %v276, 4294901760
        %490 = vmatpush.xpose.msra.mxu0 %v489
        %v491 = vand.u32 %v273, 4294901760
        %492 = vmatpush.xpose.msra.mxu0 %v491
        %v493 = vand.u32 %v270, 4294901760
        %494 = vmatpush.xpose.msra.mxu0 %v493
        %v495 = vand.u32 %v267, 4294901760
        %496 = vmatpush.xpose.msra.mxu0 %v495
        %v497 = vand.u32 %v264, 4294901760
        %498 = vmatpush.xpose.msra.mxu0 %v497
        %v499 = vand.u32 %v261, 4294901760
        %500 = vmatpush.xpose.msra.mxu0 %v499
        %v501 = vand.u32 %v258, 4294901760
        %502 = vmatpush.xpose.msra.mxu0 %v501
        %v503 = vand.u32 %v255, 4294901760
        %504 = vmatpush.xpose.msra.mxu0 %v503
        %v505 = vand.u32 %v252, 4294901760
        %506 = vmatpush.xpose.msra.mxu0 %v505
        %v507 = vand.u32 %v249, 4294901760
        %508 = vmatpush.xpose.msra.mxu0 %v507
        %v509 = vand.u32 %v246, 4294901760
        %510 = vmatpush.xpose.msra.mxu0 %v509
        %v511 = vand.u32 %v243, 4294901760
        %512 = vmatpush.xpose.msra.mxu0 %v511
        %v513 = vand.u32 %v240, 4294901760
        %514 = vmatpush.xpose.msra.mxu0 %v513
        %v515 = vand.u32 %v237, 4294901760
        %v516 = vsub.f32 %v237, %v515
        %v517 = vand.u32 %v516, 4294901760
        %518 = vmatmul.f32.gmra.mxu0 %v517
        %v519 = vpop.f32.mrf.mxu0
        %v520 = vadd.f32 %v481, %v519
        %521 = vdwg.mxu0
        %v522 = vand.u32 %v285, 4294901760
        %v523 = vsub.f32 %v285, %v522
        %v524 = vand.u32 %v523, 4294901760
        %525 = vmatpush.xpose.msra.mxu0 %v524
        %v526 = vand.u32 %v282, 4294901760
        %v527 = vsub.f32 %v282, %v526
        %v528 = vand.u32 %v527, 4294901760
        %529 = vmatpush.xpose.msra.mxu0 %v528
        %v530 = vand.u32 %v279, 4294901760
        %v531 = vsub.f32 %v279, %v530
        %v532 = vand.u32 %v531, 4294901760
        %533 = vmatpush.xpose.msra.mxu0 %v532
        %v534 = vand.u32 %v276, 4294901760
        %v535 = vsub.f32 %v276, %v534
        %v536 = vand.u32 %v535, 4294901760
        %537 = vmatpush.xpose.msra.mxu0 %v536
        %v538 = vand.u32 %v273, 4294901760
        %v539 = vsub.f32 %v273, %v538
        %v540 = vand.u32 %v539, 4294901760
        %541 = vmatpush.xpose.msra.mxu0 %v540
        %v542 = vand.u32 %v270, 4294901760
        %v543 = vsub.f32 %v270, %v542
        %v544 = vand.u32 %v543, 4294901760
        %545 = vmatpush.xpose.msra.mxu0 %v544
        %v546 = vand.u32 %v267, 4294901760
        %v547 = vsub.f32 %v267, %v546
        %v548 = vand.u32 %v547, 4294901760
        %549 = vmatpush.xpose.msra.mxu0 %v548
        %v550 = vand.u32 %v264, 4294901760
        %v551 = vsub.f32 %v264, %v550
        %v552 = vand.u32 %v551, 4294901760
        %553 = vmatpush.xpose.msra.mxu0 %v552
        %v554 = vand.u32 %v261, 4294901760
        %v555 = vsub.f32 %v261, %v554
        %v556 = vand.u32 %v555, 4294901760
        %557 = vmatpush.xpose.msra.mxu0 %v556
        %v558 = vand.u32 %v258, 4294901760
        %v559 = vsub.f32 %v258, %v558
        %v560 = vand.u32 %v559, 4294901760
        %561 = vmatpush.xpose.msra.mxu0 %v560
        %v562 = vand.u32 %v255, 4294901760
        %v563 = vsub.f32 %v255, %v562
        %v564 = vand.u32 %v563, 4294901760
        %565 = vmatpush.xpose.msra.mxu0 %v564
        %v566 = vand.u32 %v252, 4294901760
        %v567 = vsub.f32 %v252, %v566
        %v568 = vand.u32 %v567, 4294901760
        %569 = vmatpush.xpose.msra.mxu0 %v568
        %v570 = vand.u32 %v249, 4294901760
        %v571 = vsub.f32 %v249, %v570
        %v572 = vand.u32 %v571, 4294901760
        %573 = vmatpush.xpose.msra.mxu0 %v572
        %v574 = vand.u32 %v246, 4294901760
        %v575 = vsub.f32 %v246, %v574
        %v576 = vand.u32 %v575, 4294901760
        %577 = vmatpush.xpose.msra.mxu0 %v576
        %v578 = vand.u32 %v243, 4294901760
        %v579 = vsub.f32 %v243, %v578
        %v580 = vand.u32 %v579, 4294901760
        %581 = vmatpush.xpose.msra.mxu0 %v580
        %v582 = vand.u32 %v240, 4294901760
        %v583 = vsub.f32 %v240, %v582
        %v584 = vand.u32 %v583, 4294901760
        %585 = vmatpush.xpose.msra.mxu0 %v584
        %v586 = vand.u32 %v237, 4294901760
        %587 = vmatmul.f32.gmra.mxu0 %v586
        %v588 = vpop.f32.mrf.mxu0
        %v589 = vadd.f32 %v520, %v588
        %590 = vdwg.mxu0
        %v591 = vand.u32 %v285, 4294901760
        %592 = vmatpush.xpose.msra.mxu0 %v591
        %v593 = vand.u32 %v282, 4294901760
        %594 = vmatpush.xpose.msra.mxu0 %v593
        %v595 = vand.u32 %v279, 4294901760
        %596 = vmatpush.xpose.msra.mxu0 %v595
        %v597 = vand.u32 %v276, 4294901760
        %598 = vmatpush.xpose.msra.mxu0 %v597
        %v599 = vand.u32 %v273, 4294901760
        %600 = vmatpush.xpose.msra.mxu0 %v599
        %v601 = vand.u32 %v270, 4294901760
        %602 = vmatpush.xpose.msra.mxu0 %v601
        %v603 = vand.u32 %v267, 4294901760
        %604 = vmatpush.xpose.msra.mxu0 %v603
        %v605 = vand.u32 %v264, 4294901760
        %606 = vmatpush.xpose.msra.mxu0 %v605
        %v607 = vand.u32 %v261, 4294901760
        %608 = vmatpush.xpose.msra.mxu0 %v607
        %v609 = vand.u32 %v258, 4294901760
        %610 = vmatpush.xpose.msra.mxu0 %v609
        %v611 = vand.u32 %v255, 4294901760
        %612 = vmatpush.xpose.msra.mxu0 %v611
        %v613 = vand.u32 %v252, 4294901760
        %614 = vmatpush.xpose.msra.mxu0 %v613
        %v615 = vand.u32 %v249, 4294901760
        %616 = vmatpush.xpose.msra.mxu0 %v615
        %v617 = vand.u32 %v246, 4294901760
        %618 = vmatpush.xpose.msra.mxu0 %v617
        %v619 = vand.u32 %v243, 4294901760
        %620 = vmatpush.xpose.msra.mxu0 %v619
        %v621 = vand.u32 %v240, 4294901760
        %622 = vmatpush.xpose.msra.mxu0 %v621
        %v623 = vand.u32 %v237, 4294901760
        %624 = vmatmul.f32.gmra.mxu0 %v623
        %v625 = vpop.f32.mrf.mxu0
        %v626 = vadd.f32 %v589, %v625
        %627 = vdwg.mxu0
        %v628 = vld [vmem:[%s2] sm:$0xff]
        %v629 = vmul.f32 %v218, %v218
        %v630 = vmul.f32 %v219, %v219
        %v631 = vmul.f32 %v220, %v220
        %v632 = vmul.f32 %v221, %v221
        %v633 = vmul.f32 %v222, %v222
        %v634 = vmul.f32 %v223, %v223
        %v635 = vmul.f32 %v224, %v224
        %v636 = vmul.f32 %v225, %v225
        %v637 = vmul.f32 %v226, %v226
        %v638 = vmul.f32 %v227, %v227
        %v639 = vmul.f32 %v228, %v228
        %v640 = vmul.f32 %v229, %v229
        %v641 = vmul.f32 %v230, %v230
        %v642 = vmul.f32 %v231, %v231
        %v643 = vmul.f32 %v232, %v232
        %v644 = vmul.f32 %v233, %v233
        %v646 = vsel %vm235, %v628, 0
        %v649 = vsel %vm235, %v629, 0
        %v652 = vsel %vm235, %v630, 0
        %v655 = vsel %vm235, %v631, 0
        %v658 = vsel %vm235, %v632, 0
        %v661 = vsel %vm235, %v633, 0
        %v664 = vsel %vm235, %v634, 0
        %v667 = vsel %vm235, %v635, 0
        %v670 = vsel %vm235, %v636, 0
        %v673 = vsel %vm235, %v637, 0
        %v676 = vsel %vm235, %v638, 0
        %v679 = vsel %vm235, %v639, 0
        %v682 = vsel %vm235, %v640, 0
        %v685 = vsel %vm235, %v641, 0
        %v688 = vsel %vm235, %v642, 0
        %v691 = vsel %vm235, %v643, 0
        %v694 = vsel %vm235, %v644, 0
        %v696 = vand.u32 %v694, 4294901760
        %697 = vmatpush.xpose.msra.mxu0 %v696
        %v698 = vand.u32 %v691, 4294901760
        %699 = vmatpush.xpose.msra.mxu0 %v698
        %v700 = vand.u32 %v688, 4294901760
        %701 = vmatpush.xpose.msra.mxu0 %v700
        %v702 = vand.u32 %v685, 4294901760
        %703 = vmatpush.xpose.msra.mxu0 %v702
        %v704 = vand.u32 %v682, 4294901760
        %705 = vmatpush.xpose.msra.mxu0 %v704
        %v706 = vand.u32 %v679, 4294901760
        %707 = vmatpush.xpose.msra.mxu0 %v706
        %v708 = vand.u32 %v676, 4294901760
        %709 = vmatpush.xpose.msra.mxu0 %v708
        %v710 = vand.u32 %v673, 4294901760
        %711 = vmatpush.xpose.msra.mxu0 %v710
        %v712 = vand.u32 %v670, 4294901760
        %713 = vmatpush.xpose.msra.mxu0 %v712
        %v714 = vand.u32 %v667, 4294901760
        %715 = vmatpush.xpose.msra.mxu0 %v714
        %v716 = vand.u32 %v664, 4294901760
        %717 = vmatpush.xpose.msra.mxu0 %v716
        %v718 = vand.u32 %v661, 4294901760
        %719 = vmatpush.xpose.msra.mxu0 %v718
        %v720 = vand.u32 %v658, 4294901760
        %721 = vmatpush.xpose.msra.mxu0 %v720
        %v722 = vand.u32 %v655, 4294901760
        %723 = vmatpush.xpose.msra.mxu0 %v722
        %v724 = vand.u32 %v652, 4294901760
        %725 = vmatpush.xpose.msra.mxu0 %v724
        %v726 = vand.u32 %v649, 4294901760
        %727 = vmatpush.xpose.msra.mxu0 %v726
        %v728 = vand.u32 %v646, 4294901760
        %v729 = vsub.f32 %v646, %v728
        %v730 = vand.u32 %v729, 4294901760
        %v731 = vsub.f32 %v729, %v730
        %v732 = vand.u32 %v731, 4294901760
        %733 = vmatmul.f32.gmra.mxu0 %v732
        %v734 = vpop.f32.mrf.mxu0
        %v735 = vadd.f32 0.0, %v734
        %736 = vdwg.mxu0
        %v737 = vand.u32 %v694, 4294901760
        %v738 = vsub.f32 %v694, %v737
        %v739 = vand.u32 %v738, 4294901760
        %v740 = vsub.f32 %v738, %v739
        %v741 = vand.u32 %v740, 4294901760
        %742 = vmatpush.xpose.msra.mxu0 %v741
        %v743 = vand.u32 %v691, 4294901760
        %v744 = vsub.f32 %v691, %v743
        %v745 = vand.u32 %v744, 4294901760
        %v746 = vsub.f32 %v744, %v745
        %v747 = vand.u32 %v746, 4294901760
        %748 = vmatpush.xpose.msra.mxu0 %v747
        %v749 = vand.u32 %v688, 4294901760
        %v750 = vsub.f32 %v688, %v749
        %v751 = vand.u32 %v750, 4294901760
        %v752 = vsub.f32 %v750, %v751
        %v753 = vand.u32 %v752, 4294901760
        %754 = vmatpush.xpose.msra.mxu0 %v753
        %v755 = vand.u32 %v685, 4294901760
        %v756 = vsub.f32 %v685, %v755
        %v757 = vand.u32 %v756, 4294901760
        %v758 = vsub.f32 %v756, %v757
        %v759 = vand.u32 %v758, 4294901760
        %760 = vmatpush.xpose.msra.mxu0 %v759
        %v761 = vand.u32 %v682, 4294901760
        %v762 = vsub.f32 %v682, %v761
        %v763 = vand.u32 %v762, 4294901760
        %v764 = vsub.f32 %v762, %v763
        %v765 = vand.u32 %v764, 4294901760
        %766 = vmatpush.xpose.msra.mxu0 %v765
        %v767 = vand.u32 %v679, 4294901760
        %v768 = vsub.f32 %v679, %v767
        %v769 = vand.u32 %v768, 4294901760
        %v770 = vsub.f32 %v768, %v769
        %v771 = vand.u32 %v770, 4294901760
        %772 = vmatpush.xpose.msra.mxu0 %v771
        %v773 = vand.u32 %v676, 4294901760
        %v774 = vsub.f32 %v676, %v773
        %v775 = vand.u32 %v774, 4294901760
        %v776 = vsub.f32 %v774, %v775
        %v777 = vand.u32 %v776, 4294901760
        %778 = vmatpush.xpose.msra.mxu0 %v777
        %v779 = vand.u32 %v673, 4294901760
        %v780 = vsub.f32 %v673, %v779
        %v781 = vand.u32 %v780, 4294901760
        %v782 = vsub.f32 %v780, %v781
        %v783 = vand.u32 %v782, 4294901760
        %784 = vmatpush.xpose.msra.mxu0 %v783
        %v785 = vand.u32 %v670, 4294901760
        %v786 = vsub.f32 %v670, %v785
        %v787 = vand.u32 %v786, 4294901760
        %v788 = vsub.f32 %v786, %v787
        %v789 = vand.u32 %v788, 4294901760
        %790 = vmatpush.xpose.msra.mxu0 %v789
        %v791 = vand.u32 %v667, 4294901760
        %v792 = vsub.f32 %v667, %v791
        %v793 = vand.u32 %v792, 4294901760
        %v794 = vsub.f32 %v792, %v793
        %v795 = vand.u32 %v794, 4294901760
        %796 = vmatpush.xpose.msra.mxu0 %v795
        %v797 = vand.u32 %v664, 4294901760
        %v798 = vsub.f32 %v664, %v797
        %v799 = vand.u32 %v798, 4294901760
        %v800 = vsub.f32 %v798, %v799
        %v801 = vand.u32 %v800, 4294901760
        %802 = vmatpush.xpose.msra.mxu0 %v801
        %v803 = vand.u32 %v661, 4294901760
        %v804 = vsub.f32 %v661, %v803
        %v805 = vand.u32 %v804, 4294901760
        %v806 = vsub.f32 %v804, %v805
        %v807 = vand.u32 %v806, 4294901760
        %808 = vmatpush.xpose.msra.mxu0 %v807
        %v809 = vand.u32 %v658, 4294901760
        %v810 = vsub.f32 %v658, %v809
        %v811 = vand.u32 %v810, 4294901760
        %v812 = vsub.f32 %v810, %v811
        %v813 = vand.u32 %v812, 4294901760
        %814 = vmatpush.xpose.msra.mxu0 %v813
        %v815 = vand.u32 %v655, 4294901760
        %v816 = vsub.f32 %v655, %v815
        %v817 = vand.u32 %v816, 4294901760
        %v818 = vsub.f32 %v816, %v817
        %v819 = vand.u32 %v818, 4294901760
        %820 = vmatpush.xpose.msra.mxu0 %v819
        %v821 = vand.u32 %v652, 4294901760
        %v822 = vsub.f32 %v652, %v821
        %v823 = vand.u32 %v822, 4294901760
        %v824 = vsub.f32 %v822, %v823
        %v825 = vand.u32 %v824, 4294901760
        %826 = vmatpush.xpose.msra.mxu0 %v825
        %v827 = vand.u32 %v649, 4294901760
        %v828 = vsub.f32 %v649, %v827
        %v829 = vand.u32 %v828, 4294901760
        %v830 = vsub.f32 %v828, %v829
        %v831 = vand.u32 %v830, 4294901760
        %832 = vmatpush.xpose.msra.mxu0 %v831
        %v833 = vand.u32 %v646, 4294901760
        %834 = vmatmul.f32.gmra.mxu0 %v833
        %v835 = vpop.f32.mrf.mxu0
        %v836 = vadd.f32 %v735, %v835
        %837 = vdwg.mxu0
        %v838 = vand.u32 %v694, 4294901760
        %v839 = vsub.f32 %v694, %v838
        %840 = vmatpush.xpose.msra.mxu0 %v839
        %v841 = vand.u32 %v691, 4294901760
        %v842 = vsub.f32 %v691, %v841
        %843 = vmatpush.xpose.msra.mxu0 %v842
        %v844 = vand.u32 %v688, 4294901760
        %v845 = vsub.f32 %v688, %v844
        %846 = vmatpush.xpose.msra.mxu0 %v845
        %v847 = vand.u32 %v685, 4294901760
        %v848 = vsub.f32 %v685, %v847
        %849 = vmatpush.xpose.msra.mxu0 %v848
        %v850 = vand.u32 %v682, 4294901760
        %v851 = vsub.f32 %v682, %v850
        %852 = vmatpush.xpose.msra.mxu0 %v851
        %v853 = vand.u32 %v679, 4294901760
        %v854 = vsub.f32 %v679, %v853
        %855 = vmatpush.xpose.msra.mxu0 %v854
        %v856 = vand.u32 %v676, 4294901760
        %v857 = vsub.f32 %v676, %v856
        %858 = vmatpush.xpose.msra.mxu0 %v857
        %v859 = vand.u32 %v673, 4294901760
        %v860 = vsub.f32 %v673, %v859
        %861 = vmatpush.xpose.msra.mxu0 %v860
        %v862 = vand.u32 %v670, 4294901760
        %v863 = vsub.f32 %v670, %v862
        %864 = vmatpush.xpose.msra.mxu0 %v863
        %v865 = vand.u32 %v667, 4294901760
        %v866 = vsub.f32 %v667, %v865
        %867 = vmatpush.xpose.msra.mxu0 %v866
        %v868 = vand.u32 %v664, 4294901760
        %v869 = vsub.f32 %v664, %v868
        %870 = vmatpush.xpose.msra.mxu0 %v869
        %v871 = vand.u32 %v661, 4294901760
        %v872 = vsub.f32 %v661, %v871
        %873 = vmatpush.xpose.msra.mxu0 %v872
        %v874 = vand.u32 %v658, 4294901760
        %v875 = vsub.f32 %v658, %v874
        %876 = vmatpush.xpose.msra.mxu0 %v875
        %v877 = vand.u32 %v655, 4294901760
        %v878 = vsub.f32 %v655, %v877
        %879 = vmatpush.xpose.msra.mxu0 %v878
        %v880 = vand.u32 %v652, 4294901760
        %v881 = vsub.f32 %v652, %v880
        %882 = vmatpush.xpose.msra.mxu0 %v881
        %v883 = vand.u32 %v649, 4294901760
        %v884 = vsub.f32 %v649, %v883
        %885 = vmatpush.xpose.msra.mxu0 %v884
        %v886 = vand.u32 %v646, 4294901760
        %v887 = vsub.f32 %v646, %v886
        %888 = vmatmul.f32.gmra.mxu0 %v887
        %v889 = vpop.f32.mrf.mxu0
        %v890 = vadd.f32 %v836, %v889
        %891 = vdwg.mxu0
        %v892 = vand.u32 %v694, 4294901760
        %893 = vmatpush.xpose.msra.mxu0 %v892
        %v894 = vand.u32 %v691, 4294901760
        %895 = vmatpush.xpose.msra.mxu0 %v894
        %v896 = vand.u32 %v688, 4294901760
        %897 = vmatpush.xpose.msra.mxu0 %v896
        %v898 = vand.u32 %v685, 4294901760
        %899 = vmatpush.xpose.msra.mxu0 %v898
        %v900 = vand.u32 %v682, 4294901760
        %901 = vmatpush.xpose.msra.mxu0 %v900
        %v902 = vand.u32 %v679, 4294901760
        %903 = vmatpush.xpose.msra.mxu0 %v902
        %v904 = vand.u32 %v676, 4294901760
        %905 = vmatpush.xpose.msra.mxu0 %v904
        %v906 = vand.u32 %v673, 4294901760
        %907 = vmatpush.xpose.msra.mxu0 %v906
        %v908 = vand.u32 %v670, 4294901760
        %909 = vmatpush.xpose.msra.mxu0 %v908
        %v910 = vand.u32 %v667, 4294901760
        %911 = vmatpush.xpose.msra.mxu0 %v910
        %v912 = vand.u32 %v664, 4294901760
        %913 = vmatpush.xpose.msra.mxu0 %v912
        %v914 = vand.u32 %v661, 4294901760
        %915 = vmatpush.xpose.msra.mxu0 %v914
        %v916 = vand.u32 %v658, 4294901760
        %917 = vmatpush.xpose.msra.mxu0 %v916
        %v918 = vand.u32 %v655, 4294901760
        %919 = vmatpush.xpose.msra.mxu0 %v918
        %v920 = vand.u32 %v652, 4294901760
        %921 = vmatpush.xpose.msra.mxu0 %v920
        %v922 = vand.u32 %v649, 4294901760
        %923 = vmatpush.xpose.msra.mxu0 %v922
        %v924 = vand.u32 %v646, 4294901760
        %v925 = vsub.f32 %v646, %v924
        %v926 = vand.u32 %v925, 4294901760
        %927 = vmatmul.f32.gmra.mxu0 %v926
        %v928 = vpop.f32.mrf.mxu0
        %v929 = vadd.f32 %v890, %v928
        %930 = vdwg.mxu0
        %v931 = vand.u32 %v694, 4294901760
        %v932 = vsub.f32 %v694, %v931
        %v933 = vand.u32 %v932, 4294901760
        %934 = vmatpush.xpose.msra.mxu0 %v933
        %v935 = vand.u32 %v691, 4294901760
        %v936 = vsub.f32 %v691, %v935
        %v937 = vand.u32 %v936, 4294901760
        %938 = vmatpush.xpose.msra.mxu0 %v937
        %v939 = vand.u32 %v688, 4294901760
        %v940 = vsub.f32 %v688, %v939
        %v941 = vand.u32 %v940, 4294901760
        %942 = vmatpush.xpose.msra.mxu0 %v941
        %v943 = vand.u32 %v685, 4294901760
        %v944 = vsub.f32 %v685, %v943
        %v945 = vand.u32 %v944, 4294901760
        %946 = vmatpush.xpose.msra.mxu0 %v945
        %v947 = vand.u32 %v682, 4294901760
        %v948 = vsub.f32 %v682, %v947
        %v949 = vand.u32 %v948, 4294901760
        %950 = vmatpush.xpose.msra.mxu0 %v949
        %v951 = vand.u32 %v679, 4294901760
        %v952 = vsub.f32 %v679, %v951
        %v953 = vand.u32 %v952, 4294901760
        %954 = vmatpush.xpose.msra.mxu0 %v953
        %v955 = vand.u32 %v676, 4294901760
        %v956 = vsub.f32 %v676, %v955
        %v957 = vand.u32 %v956, 4294901760
        %958 = vmatpush.xpose.msra.mxu0 %v957
        %v959 = vand.u32 %v673, 4294901760
        %v960 = vsub.f32 %v673, %v959
        %v961 = vand.u32 %v960, 4294901760
        %962 = vmatpush.xpose.msra.mxu0 %v961
        %v963 = vand.u32 %v670, 4294901760
        %v964 = vsub.f32 %v670, %v963
        %v965 = vand.u32 %v964, 4294901760
        %966 = vmatpush.xpose.msra.mxu0 %v965
        %v967 = vand.u32 %v667, 4294901760
        %v968 = vsub.f32 %v667, %v967
        %v969 = vand.u32 %v968, 4294901760
        %970 = vmatpush.xpose.msra.mxu0 %v969
        %v971 = vand.u32 %v664, 4294901760
        %v972 = vsub.f32 %v664, %v971
        %v973 = vand.u32 %v972, 4294901760
        %974 = vmatpush.xpose.msra.mxu0 %v973
        %v975 = vand.u32 %v661, 4294901760
        %v976 = vsub.f32 %v661, %v975
        %v977 = vand.u32 %v976, 4294901760
        %978 = vmatpush.xpose.msra.mxu0 %v977
        %v979 = vand.u32 %v658, 4294901760
        %v980 = vsub.f32 %v658, %v979
        %v981 = vand.u32 %v980, 4294901760
        %982 = vmatpush.xpose.msra.mxu0 %v981
        %v983 = vand.u32 %v655, 4294901760
        %v984 = vsub.f32 %v655, %v983
        %v985 = vand.u32 %v984, 4294901760
        %986 = vmatpush.xpose.msra.mxu0 %v985
        %v987 = vand.u32 %v652, 4294901760
        %v988 = vsub.f32 %v652, %v987
        %v989 = vand.u32 %v988, 4294901760
        %990 = vmatpush.xpose.msra.mxu0 %v989
        %v991 = vand.u32 %v649, 4294901760
        %v992 = vsub.f32 %v649, %v991
        %v993 = vand.u32 %v992, 4294901760
        %994 = vmatpush.xpose.msra.mxu0 %v993
        %v995 = vand.u32 %v646, 4294901760
        %996 = vmatmul.f32.gmra.mxu0 %v995
        %v997 = vpop.f32.mrf.mxu0
        %v998 = vadd.f32 %v929, %v997
        %999 = vdwg.mxu0
        %v1000 = vand.u32 %v694, 4294901760
        %1001 = vmatpush.xpose.msra.mxu0 %v1000
        %v1002 = vand.u32 %v691, 4294901760
        %1003 = vmatpush.xpose.msra.mxu0 %v1002
        %v1004 = vand.u32 %v688, 4294901760
        %1005 = vmatpush.xpose.msra.mxu0 %v1004
        %v1006 = vand.u32 %v685, 4294901760
        %1007 = vmatpush.xpose.msra.mxu0 %v1006
        %v1008 = vand.u32 %v682, 4294901760
        %1009 = vmatpush.xpose.msra.mxu0 %v1008
        %v1010 = vand.u32 %v679, 4294901760
        %1011 = vmatpush.xpose.msra.mxu0 %v1010
        %v1012 = vand.u32 %v676, 4294901760
        %1013 = vmatpush.xpose.msra.mxu0 %v1012
        %v1014 = vand.u32 %v673, 4294901760
        %1015 = vmatpush.xpose.msra.mxu0 %v1014
        %v1016 = vand.u32 %v670, 4294901760
        %1017 = vmatpush.xpose.msra.mxu0 %v1016
        %v1018 = vand.u32 %v667, 4294901760
        %1019 = vmatpush.xpose.msra.mxu0 %v1018
        %v1020 = vand.u32 %v664, 4294901760
        %1021 = vmatpush.xpose.msra.mxu0 %v1020
        %v1022 = vand.u32 %v661, 4294901760
        %1023 = vmatpush.xpose.msra.mxu0 %v1022
        %v1024 = vand.u32 %v658, 4294901760
        %1025 = vmatpush.xpose.msra.mxu0 %v1024
        %v1026 = vand.u32 %v655, 4294901760
        %1027 = vmatpush.xpose.msra.mxu0 %v1026
        %v1028 = vand.u32 %v652, 4294901760
        %1029 = vmatpush.xpose.msra.mxu0 %v1028
        %v1030 = vand.u32 %v649, 4294901760
        %1031 = vmatpush.xpose.msra.mxu0 %v1030
        %v1032 = vand.u32 %v646, 4294901760
        %1033 = vmatmul.f32.gmra.mxu0 %v1032
        %v1034 = vpop.f32.mrf.mxu0
        %v1035 = vadd.f32 %v998, %v1034
        %1036 = vdwg.mxu0
        %v1037 = vld [vmem:[%s3] sm:$0xff]
        %1039 = vset.pattern.permute.xlu0 0
        %1040 = vperm.xlu0 %1039, %v1037
        %v1041 = vpop.permute.xlu0 %1040
        %v1043 = vadd.f32 %v1041, %v626
        %v1044 = vadd.f32 %v1043, %v1035
        %1045 = vst [vmem:[%s203] sm:$0xff] %v1044
        %s1046 = sand.u32 %s115, 1
        %s1047 = scalar_lea.sflag [#allocation3], %s1046
        %s1048 = sand.u32 %s115, 1
        %s1049 = smul.addr %s1048, 8
        %s1050 = scalar_lea.vmem [#allocation2], %s1049
        // Predicated region
        $region37: #{tpu_custom_call.1} parent=35 // pred_check
          %p1051 = pneg %p125
        $region38: #{tpu_custom_call.1} parent=35 // pred_check_branch
          %1053 = sbr.rel (%p1051) target = $region40
        $region39: #{tpu_custom_call.1} parent=35 // pred_region
          %1055 = vsyncadd %s1047, 0
          %s1056 = smul.addr %s18, 8
          %s1057 = scalar_lea.hbm %s4, %s1056
          %s1059 = sshll.u32 %s1050, 4
          %s1060 = int_to_ptr.vmem [resolvable:$true] %s1059
          %s1061 = sshll.u32 %s1057, 4
          %s1062 = int_to_ptr.hbm [resolvable:$true] %s1061
          %1064 = dma.vmem_to_hbm [thread:$0]  %s1060, 128, %s1062, %s1047
        $region40: #{tpu_custom_call.1} parent=35 // pred_fallthru
          _
      $region36: #{tpu_custom_call.1} parent=5 // pred_fallthru
        _
      %p1065 = scmp.le.s32.totalorder 2, %s13
      // Predicated region
      $region41: #{tpu_custom_call.1} parent=5 // pred_check
        %p1066 = pneg %p1065
      $region42: #{tpu_custom_call.1} parent=5 // pred_check_branch
        %1068 = sbr.rel (%p1066) target = $region44
      $region43: #{tpu_custom_call.1} parent=5 // pred_region
        %s1069 = ssub.s32 %s13, 2
        // Predicated region
        $region45: #{tpu_custom_call.1} parent=43 // pred_check
          %p1070 = pneg %p131
        $region46: #{tpu_custom_call.1} parent=43 // pred_check_branch
          %1072 = sbr.rel (%p1070) target = $region48
        $region47: #{tpu_custom_call.1} parent=43 // pred_region
          %s1073 = sand.u32 %s116, 1
          %s1074 = scalar_lea.sflag [#allocation3], %s1073
          %s1075 = sand.u32 %s116, 1
          %s1076 = smul.addr %s1075, 8
          %s1077 = scalar_lea.vmem [#allocation2], %s1076
          %1079 = dma.done %s1074, 128
        $region48: #{tpu_custom_call.1} parent=43 // pred_fallthru
          _
      $region44: #{tpu_custom_call.1} parent=5 // pred_fallthru
        _
    $region6: #{tpu_custom_call.1} parent=1 // loop_footer
      %s17 = sadd.s32 1, %s13
    $region7: #{tpu_custom_call.1} parent=1 // loop_footer_branch
      %12 = sbr.rel target = $region3
    $region8: #{tpu_custom_call.1} parent=1 // loop_exit
      _
    %1080 = vsyncpa [#allocation3], 1
    %s1081 = scalar_lea.sflag [#allocation3], 1
    %1082 = vsyncpa %s1081, 1

</llo_original>
